<compile_context>
chip_gen: v6e
topology: v6e:2x2x1
jax: 0.10.0
libtpu: 0.0.40
codegen_flags: <defaults>
</compile_context>

<pallas_src>
import functools
from typing import Any, NamedTuple, Optional

import jax
import jax.numpy as jnp
from jax.experimental import pallas as pl
from jax.experimental.pallas import tpu as pltpu


# ---------------------------------------------------------------------------
# Kernels
# ---------------------------------------------------------------------------
def _green_block_kernel(x_ref, a_ref, wlin_ref, wpost_ref, out_ref):
    """Full-N path. Bb batch elements are packed onto the lane axis:
       x_ref (N, Bb*C) bf16 | a_ref (N, N) bf16 | wlin_ref (Bb*C, Bb*C) bf16
       wpost_ref (Bb*C, Bb*2C) bf16 | out_ref (N, Bb*2C) out_dtype."""
    xl = jnp.dot(x_ref[...], wlin_ref[...], preferred_element_type=jnp.float32)
    agg = jnp.dot(a_ref[...], xl.astype(a_ref.dtype),
                  preferred_element_type=jnp.float32)
    fst = jax.nn.sigmoid(agg)        # f32 elementwise (v5e has no bf16 VPU/EUP)
    last = jnp.dot(fst.astype(wpost_ref.dtype), wpost_ref[...],
                   preferred_element_type=jnp.float32)
    out_ref[...] = jnp.maximum(last, 0.0).astype(out_ref.dtype)


def _green_block_row_kernel(x_ref, a_ref, wlin_ref, wpost_ref, out_ref, xl_ref):
    """Row-tiled path, grid = (G batch blocks, R row tiles). A_norm arrives as
    a (tm, N) row block; X @ W_lin is computed once per batch block into the
    bf16 VMEM scratch xl_ref at r == 0 and reused for every row tile."""
    @pl.when(pl.program_id(1) == 0)
    def _():
        xl_ref[...] = jnp.dot(
            x_ref[...], wlin_ref[...],
            preferred_element_type=jnp.float32).astype(xl_ref.dtype)

    agg = jnp.dot(a_ref[...], xl_ref[...], preferred_element_type=jnp.float32)
    fst = jax.nn.sigmoid(agg)
    last = jnp.dot(fst.astype(wpost_ref.dtype), wpost_ref[...],
                   preferred_element_type=jnp.float32)
    out_ref[...] = jnp.maximum(last, 0.0).astype(out_ref.dtype)


# ---------------------------------------------------------------------------
# Params / config containers
# ---------------------------------------------------------------------------
class GreenBlockParams(NamedTuple):
    a_norm: jax.Array   # (N, N) bf16, normalized adjacency (shared by batches)
    w_lin: jax.Array    # (Bb*C, Bb*C) bf16, kron(I_Bb, W_lin^T)
    w_post: jax.Array   # (Bb*C, Bb*2C) bf16, kron(I_Bb, W_post)


class GreenBlockConfig(NamedTuple):
    batch: int
    num_nodes: int
    channels: int
    batch_block: int
    node_block: Optional[int]          # None -> full-N kernel
    out_dtype: Any
    vmem_limit_bytes: int
    single_buffer_invariants: bool


# ---------------------------------------------------------------------------
# Hardware-aware helpers
# ---------------------------------------------------------------------------
def _tpu_vmem_and_cores():
    """Best-effort (vmem_capacity_bytes, tensorcores_per_chip)."""
    vmem = 128 << 20
    try:
        info = pltpu.get_tpu_info()
        v = getattr(info, "vmem_capacity_bytes", None)
        if v:
            vmem = int(v)
    except Exception:
        pass
    # Only v7x-class chips have 64 MiB VMEM per TensorCore; they carry 2 TCs.
    n_tc = 2 if vmem <= (64 << 20) else 1
    return vmem, n_tc


def _probe_identity_kernel(x_ref, o_ref):
    o_ref[...] = x_ref[...]


@functools.lru_cache(maxsize=1)
def _single_buffering_supported():
    """Probe once whether this build accepts pipeline_mode=pl.Buffered(1)."""
    try:
        x = jnp.zeros((8, 128), jnp.float32)
        out = pl.pallas_call(
            _probe_identity_kernel,
            out_shape=jax.ShapeDtypeStruct((8, 128), jnp.float32),
            grid=(1,),
            in_specs=[pl.BlockSpec((8, 128), lambda i: (0, 0),
                                   pipeline_mode=pl.Buffered(1))],
            out_specs=pl.BlockSpec((8, 128), lambda i: (0, 0)),
        )(x)
        jax.block_until_ready(out)
        return True
    except Exception:
        return False


def _invariant_spec(shape, index_map, single_buffer):
    """BlockSpec for a grid-invariant operand; single-buffer it if supported."""
    if single_buffer:
        return pl.BlockSpec(shape, index_map, pipeline_mode=pl.Buffered(1))
    return pl.BlockSpec(shape, index_map)


def _choose_batch_block(B, C, N, *, out_itemsize, vmem_bytes, n_tc, lane=128):
    """Generation-aware batch block Bb (batch elements packed per grid step)."""
    C2 = 2 * C
    budget = int(0.45 * vmem_bytes)

    def fits(bb):
        bbc, bbc2 = bb * C, bb * C2
        need = ((N * N + bbc * bbc + bbc * bbc2) * 2        # invariants, bf16
                + 2 * N * bbc * 2                           # x block, 2 bufs
                + 2 * N * bbc2 * out_itemsize)              # out block, 2 bufs
        return need <= budget

    allowed = [d for d in range(1, B + 1) if B % d == 0 and fits(d)] or [1]
    if n_tc >= 2 and B >= n_tc:
        # Keep at least n_tc parallel grid steps so every TensorCore has work.
        allowed = [d for d in allowed if (B // d) >= n_tc] or [min(allowed)]
    # Prefer the smallest Bb that reaches lane density (input/intermediate lane
    # width first, then output lane width): larger Bb only adds kron-redundant
    # MXU work on the two channel matmuls.
    for dense in (lambda d: (d * C) % lane == 0,
                  lambda d: (d * C2) % lane == 0):
        dense_ok = [d for d in allowed if dense(d)]
        if dense_ok:
            return min(dense_ok)
    # No lane-dense option: largest Bb on a single TC (amortize ~0.35 us/step
    # grid overhead), smallest on multi-TC (maximize parallel steps).
    return max(allowed) if n_tc == 1 else min(allowed)


def _choose_node_block(N, bbC, bbC2, out_itemsize, vmem_bytes):
    """None => full-N kernel; otherwise the largest 128-multiple row tile that
    divides N and keeps the working set inside a conservative VMEM budget."""
    budget = int(0.45 * vmem_bytes)
    full_need = ((N * N + bbC * bbC + bbC * bbC2) * 2
                 + 2 * N * bbC * 2 + 2 * N * bbC2 * out_itemsize)
    if full_need <= budget or N % 128 != 0:
        return None

    def tiled_need(tm):
        return ((bbC * bbC + bbC * bbC2) * 2      # weight invariants
                + 2 * tm * N * 2                  # A row blocks (2 bufs)
                + 2 * N * bbC * 2                 # x blocks (2 bufs)
                + N * bbC * 2                     # xl scratch
                + 2 * tm * bbC2 * out_itemsize)   # out row blocks (2 bufs)

    cands = [tm for tm in range(128, N, 128)
             if N % tm == 0 and tiled_need(tm) <= budget]
    return max(cands) if cands else 128


def _vmem_limit(N, bbC, bbC2, out_itemsize, node_block, single_buf, vmem_bytes):
    inv_mult = 1 if single_buf else 2
    if node_block is None:
        need = (inv_mult * (N * N + bbC * bbC + bbC * bbC2) * 2
                + 2 * N * bbC * 2 + 2 * N * bbC2 * out_itemsize)
    else:
        tm = node_block
        need = (inv_mult * (bbC * bbC + bbC * bbC2) * 2
                + 2 * tm * N * 2 + 2 * N * bbC * 2
                + N * bbC * 2 + 2 * tm * bbC2 * out_itemsize)
    cap = (48 << 20) if vmem_bytes <= (64 << 20) else (96 << 20)
    return int(min(max(4 * need, 16 << 20), cap))


# ---------------------------------------------------------------------------
# One-time operand preparation (hoisted out of the hot path — cache the result)
# ---------------------------------------------------------------------------
def _fold_post_sigmoid_chain(w_u1, w_u2, w_l1, w_l2, w_last):
    """W_post (C, 2C): valid because upper_1/upper_2/lower_1/lower_2/last are
    all bias-free Linears with no nonlinearity in between."""
    C = w_u1.shape[0]
    hp = jax.lax.Precision.HIGHEST
    w_last_t = w_last.T                                             # (2C, 2C)
    upper = jnp.matmul(jnp.matmul(w_u1.T, w_u2.T, precision=hp),
                       w_last_t[:C, :], precision=hp)
    lower = jnp.matmul(jnp.matmul(w_l1.T, w_l2.T, precision=hp),
                       w_last_t[C:, :], precision=hp)
    return upper + lower                                            # (C, 2C)


def prepare_green_block_params(a_norm, w_lin, w_u1, w_u2, w_l1, w_l2, w_last, *,
                               batch, batch_block=None, node_block=None,
                               out_dtype=jnp.bfloat16):
    """Run ONCE (e.g. at module init) and cache; returns (params, config)."""
    N = a_norm.shape[0]
    C = w_lin.shape[0]
    out_itemsize = jnp.dtype(out_dtype).itemsize
    vmem_bytes, n_tc = _tpu_vmem_and_cores()

    if batch_block is None:
        batch_block = _choose_batch_block(
            batch, C, N, out_itemsize=out_itemsize,
            vmem_bytes=vmem_bytes, n_tc=n_tc)
    assert batch % batch_block == 0
    Bb = batch_block
    bbC, bbC2 = Bb * C, Bb * 2 * C

    if node_block is None:
        node_block = _choose_node_block(N, bbC, bbC2, out_itemsize, vmem_bytes)
    if node_block is not None:
        assert N % node_block == 0 and node_block % 8 == 0

    w_post = _fold_post_sigmoid_chain(w_u1, w_u2, w_l1, w_l2, w_last)  # (C, 2C)
    wlin_t = w_lin.T.astype(jnp.float32)                               # (C, C)
    if Bb > 1:
        eye = jnp.eye(Bb, dtype=jnp.float32)
        wlin_t = jnp.kron(eye, wlin_t)
        w_post = jnp.kron(eye, w_post.astype(jnp.float32))

    params = GreenBlockParams(
        a_norm=a_norm.astype(jnp.bfloat16),
        w_lin=wlin_t.astype(jnp.bfloat16),
        w_post=w_post.astype(jnp.bfloat16))

    single_buf = _single_buffering_supported()
    cfg = GreenBlockConfig(
        batch=batch, num_nodes=N, channels=C,
        batch_block=Bb, node_block=node_block, out_dtype=out_dtype,
        vmem_limit_bytes=_vmem_limit(N, bbC, bbC2, out_itemsize,
                                     node_block, single_buf, vmem_bytes),
        single_buffer_invariants=single_buf)
    return params, cfg


# ---------------------------------------------------------------------------
# Hot path (jit me, e.g. jax.jit(functools.partial(green_block_apply, config=cfg)))
# ---------------------------------------------------------------------------
def green_block_apply(x, params, config):
    """x: (B, N, C) float32 -> (B, N, 2C) in config.out_dtype."""
    B, N, C = config.batch, config.num_nodes, config.channels
    assert x.shape == (B, N, C)
    C2 = 2 * C
    Bb = config.batch_block
    G = B // Bb
    bbC, bbC2 = Bb * C, Bb * C2
    sbuf = config.single_buffer_invariants
    out_itemsize = jnp.dtype(config.out_dtype).itemsize

    # (B, N, C) -> (G, N, Bb*C): batch folded onto the lane axis.
    x_packed = jnp.reshape(
        jnp.transpose(jnp.reshape(x, (G, Bb, N, C)), (0, 2, 1, 3)),
        (G, N, bbC)).astype(jnp.bfloat16)

    tm = config.node_block
    flops = G * (2 * N * bbC * bbC + 2 * N * N * bbC + 2 * N * bbC * bbC2)
    a_bytes = params.a_norm.size * 2 * (1 if tm is None else G)
    cost = pl.CostEstimate(
        flops=flops, transcendentals=B * N * C,
        bytes_accessed=(x_packed.size * 2 + a_bytes
                        + params.w_lin.size * 2 + params.w_post.size * 2
                        + G * N * bbC2 * out_itemsize))

    if tm is None:
        grid_spec = pltpu.PrefetchScalarGridSpec(
            num_scalar_prefetch=0,
            grid=(G,),
            in_specs=[
                pl.BlockSpec((pl.Squeezed(), N, bbC), lambda g: (g, 0, 0)),
                _invariant_spec((N, N), lambda g: (0, 0), sbuf),
                _invariant_spec((bbC, bbC), lambda g: (0, 0), sbuf),
                _invariant_spec((bbC, bbC2), lambda g: (0, 0), sbuf),
            ],
            out_specs=pl.BlockSpec((pl.Squeezed(), N, bbC2),
                                   lambda g: (g, 0, 0)),
        )
        kernel = _green_block_kernel
        dim_sems = ("parallel",)
    else:
        R = N // tm
        grid_spec = pltpu.PrefetchScalarGridSpec(
            num_scalar_prefetch=0,
            grid=(G, R),
            in_specs=[
                pl.BlockSpec((pl.Squeezed(), N, bbC), lambda g, r: (g, 0, 0)),
                pl.BlockSpec((tm, N), lambda g, r: (r, 0)),
                _invariant_spec((bbC, bbC), lambda g, r: (0, 0), sbuf),
                _invariant_spec((bbC, bbC2), lambda g, r: (0, 0), sbuf),
            ],
            out_specs=pl.BlockSpec((pl.Squeezed(), tm, bbC2),
                                   lambda g, r: (g, r, 0)),
            scratch_shapes=[pltpu.VMEM((N, bbC), jnp.bfloat16)],
        )
        kernel = _green_block_row_kernel
        dim_sems = ("parallel", "arbitrary")

    out = pl.pallas_call(
        kernel,
        out_shape=jax.ShapeDtypeStruct((G, N, bbC2), config.out_dtype),
        grid_spec=grid_spec,
        compiler_params=pltpu.CompilerParams(
            dimension_semantics=dim_sems,
            vmem_limit_bytes=config.vmem_limit_bytes),
        cost_estimate=cost,
    )(x_packed, params.a_norm, params.w_lin, params.w_post)

    # (G, N, Bb*2C) -> (B, N, 2C)
    return jnp.reshape(
        jnp.transpose(jnp.reshape(out, (G, N, Bb, C2)), (0, 2, 1, 3)),
        (B, N, C2))


# ---------------------------------------------------------------------------
# Adjacency normalization (dense equivalent of the PyTorch edge-index math)
# ---------------------------------------------------------------------------
def build_norm_adj(adj):
    """deg[i] = occurrences of i as a target (nonzeros in adj[:, i]) + 1 self
    loop; self-loop edges carry weight adj[i, i] (0 for a zero-diagonal adj),
    exactly as in `norm = dis[row] * dis[col] * adj[row, col]`."""
    deg = jnp.sum(adj != 0, axis=0).astype(jnp.float32) + 1.0
    dis = jnp.where(deg > 0, deg ** -0.5, 0.0)
    return (dis[:, None] * adj.T * dis[None, :]).astype(jnp.float32)


# ---------------------------------------------------------------------------
# References
# ---------------------------------------------------------------------------
def green_block_matched_ref(x, a_bf, wlin_bf, wpost_bf, out_dtype):
    """Pure-JAX mirror of the kernel's bf16-operand / f32-accumulate numerics
    (same operand roundings, same final output rounding)."""
    hp = jax.lax.Precision.HIGHEST
    f32, bf16 = jnp.float32, jnp.bfloat16
    x32 = x.astype(bf16).astype(f32)
    a32 = a_bf.astype(f32)
    wl32 = wlin_bf.astype(f32)
    wp32 = wpost_bf.astype(f32)
    xl = jnp.einsum('bnc,cd->bnd', x32, wl32, precision=hp)
    xl = xl.astype(bf16).astype(f32)
    agg = jnp.einsum('nm,bmd->bnd', a32, xl, precision=hp)
    fst = jax.nn.sigmoid(agg).astype(bf16).astype(f32)
    last = jnp.einsum('bnc,ce->bne', fst, wp32, precision=hp)
    return jnp.maximum(last, 0.0).astype(out_dtype).astype(f32)


def green_block_reference(x, a_norm, w_lin, w_u1, w_u2, w_l1, w_l2, w_last):
    """Original-chain f32 reference (PyTorch semantics)."""
    hp = jax.lax.Precision.HIGHEST
    xl = jnp.einsum('bnc,dc->bnd', x, w_lin, precision=hp)
    fst = jax.nn.sigmoid(jnp.einsum('ij,bjc->bic', a_norm, xl, precision=hp))
    upper = jnp.einsum('bnc,dc->bnd',
                       jnp.einsum('bnc,dc->bnd', fst, w_u1, precision=hp),
                       w_u2, precision=hp)
    lower = jnp.einsum('bnc,dc->bnd',
                       jnp.einsum('bnc,dc->bnd', fst, w_l1, precision=hp),
                       w_l2, precision=hp)
    combined = jnp.concatenate([upper, lower], axis=2)
    last = jnp.einsum('bnc,dc->bnd', combined, w_last, precision=hp)
    return jnp.maximum(last, 0.0)


# ---------------------------------------------------------------------------
# Demo / self-test
# ---------------------------------------------------------------------------
def _linear_weight(key, out_c, in_c):
    bound = 1.0 / float(in_c) ** 0.5
    return jax.random.uniform(key, (out_c, in_c), minval=-bound, maxval=bound,
                              dtype=jnp.float32)


def _make_case(key, B, N, C):
    kx, kadj, k1, k2, k3, k4, k5, k6 = jax.random.split(key, 8)
    x = jax.random.normal(kx, (B, N, C), dtype=jnp.float32)
    upper = jnp.triu((jax.random.uniform(kadj, (N, N)) > 0.6)
                     .astype(jnp.float32), k=1)
    adj = upper + upper.T          # symmetric, zero diagonal
    ws = dict(w_lin=_linear_weight(k1, C, C),
              w_u1=_linear_weight(k2, C, C),
              w_u2=_linear_weight(k3, C, C),
              w_l1=_linear_weight(k4, C, C),
              w_l2=_linear_weight(k5, C, C),
              w_last=_linear_weight(k6, 2 * C, 2 * C))
    return x, adj, ws


def _run_case(key, B, N, C, **prep_kwargs):
    x, adj, ws = _make_case(key, B, N, C)
    a_norm = build_norm_adj(adj)

    # One-time prep (cache this in real use); jitted hot path below.
    params, cfg = prepare_green_block_params(a_norm, batch=B, **ws, **prep_kwargs)
    fwd = jax.jit(functools.partial(green_block_apply, config=cfg))
    out = jax.block_until_ready(fwd(x, params))
    assert out.shape == (B, N, 2 * C)
    out32 = out.astype(jnp.float32)

    # Tight check: identical bf16-rounded operands / rounding points, f32 math.
    matched = green_block_matched_ref(
        x, params.a_norm, params.w_lin[:C, :C], params.w_post[:C, :2 * C],
        cfg.out_dtype)
    assert jnp.allclose(out32, matched, atol=3e-2, rtol=3e-2), \
        float(jnp.max(jnp.abs(out32 - matched)))

    # Loose semantic check vs the original full-f32 chain (bf16 quantization of
    # operands/output is the only difference).
    ref = green_block_reference(x, a_norm, **ws)
    assert jnp.allclose(out32, ref, atol=8e-2, rtol=8e-2), \
        float(jnp.max(jnp.abs(out32 - ref)))


if __name__ == "__main__":
    key = jax.random.PRNGKey(0)
    k1, k2 = jax.random.split(key)
    # Small shapes implied by the module (full-N kernel path).
    _run_case(k1, B=2, N=16, C=32)
    # Larger graph exercising the row-tiled (node_block) path.
    _run_case(k2, B=4, N=256, C=32, node_block=128)
    print("KERNEL_OK")
</pallas_src>

<mosaic_0001>
module attributes {stable_mosaic.version = 11 : i64} {
  func.func @_probe_identity_kernel(%arg0: i32, %arg1: memref<8x128xf32, #tpu.memory_space<vmem>>, %arg2: memref<8x128xf32, #tpu.memory_space<vmem>>) attributes {dimension_semantics = [#tpu.dimension_semantics<arbitrary>], iteration_bounds = array<i64: 1>, scalar_prefetch = 0 : i64, scratch_operands = 0 : i64, tpu.core_type = #tpu.core_type<tc>, window_params = [{pipeline_mode = #tpu.pipeline_mode<synchronous>, transform_indices = @transform_0, window_bounds = array<i64: 8, 128>}, {pipeline_mode = #tpu.pipeline_mode<synchronous>, transform_indices = @transform_1, window_bounds = array<i64: 8, 128>}]} {
    %c0 = arith.constant 0 : index
    %c0_0 = arith.constant 0 : index
    %0 = vector.load %arg1[%c0, %c0_0] : memref<8x128xf32, #tpu.memory_space<vmem>>, vector<8x128xf32>
    %c0_1 = arith.constant 0 : index
    %c0_2 = arith.constant 0 : index
    %1 = vector.load %arg2[%c0_1, %c0_2] : memref<8x128xf32, #tpu.memory_space<vmem>>, vector<8x128xf32>
    tpu.vector_store %arg2[%c0_1, %c0_2], %0 {strides = array<i32>} : memref<8x128xf32, #tpu.memory_space<vmem>>, vector<8x128xf32>,
    return
  }
  func.func @transform_0(%arg0: i32) -> (i32, i32) {
    %c0_i32 = arith.constant 0 : i32
    %c0_i32_0 = arith.constant 0 : i32
    %c0_i32_1 = arith.constant 0 : i32
    return %c0_i32, %c0_i32_0 : i32, i32
  }
  func.func @transform_1(%arg0: i32) -> (i32, i32) {
    %c0_i32 = arith.constant 0 : i32
    %c0_i32_0 = arith.constant 0 : i32
    %c0_i32_1 = arith.constant 0 : i32
    return %c0_i32, %c0_i32_0 : i32, i32
  }
}

module attributes {stable_mosaic.version = 11 : i64} {
  func.func @_green_block_kernel(%arg0: i32, %arg1: memref<1x16x64xbf16, #tpu.memory_space<vmem>>, %arg2: memref<16x16xbf16, #tpu.memory_space<vmem>>, %arg3: memref<64x64xbf16, #tpu.memory_space<vmem>>, %arg4: memref<64x128xbf16, #tpu.memory_space<vmem>>, %arg5: memref<1x16x128xbf16, #tpu.memory_space<vmem>>) attributes {dimension_semantics = [#tpu.dimension_semantics<parallel>], iteration_bounds = array<i64: 1>, scalar_prefetch = 0 : i64, scratch_operands = 0 : i64, tpu.core_type = #tpu.core_type<tc>, window_params = [{transform_indices = @transform_0, window_bounds = array<i64: 1, 16, 64>}, {pipeline_mode = #tpu.pipeline_mode<synchronous>, transform_indices = @transform_1, window_bounds = array<i64: 16, 16>}, {pipeline_mode = #tpu.pipeline_mode<synchronous>, transform_indices = @transform_2, window_bounds = array<i64: 64, 64>}, {pipeline_mode = #tpu.pipeline_mode<synchronous>, transform_indices = @transform_3, window_bounds = array<i64: 64, 128>}, {transform_indices = @transform_4, window_bounds = array<i64: 1, 16, 128>}]} {
    %c0 = arith.constant 0 : index
    %c0_0 = arith.constant 0 : index
    %c0_1 = arith.constant 0 : index
    %0 = vector.load %arg1[%c0, %c0_0, %c0_1] : memref<1x16x64xbf16, #tpu.memory_space<vmem>>, vector<1x16x64xbf16>
    %1 = vector.shape_cast %0 : vector<1x16x64xbf16> to vector<16x64xbf16>
    %c0_2 = arith.constant 0 : index
    %c0_3 = arith.constant 0 : index
    %2 = vector.load %arg3[%c0_2, %c0_3] : memref<64x64xbf16, #tpu.memory_space<vmem>>, vector<64x64xbf16>
    %cst = arith.constant dense<0.000000e+00> : vector<16x64xf32>
    %3 = tpu.matmul %1, %2, %cst {dimension_numbers = #tpu.dot_dimension_numbers<[1], [0], [0], [1], [0, 0, 1, 1], [], []>} : vector<16x64xbf16>, vector<64x64xbf16>, vector<16x64xf32> -> vector<16x64xf32>
    %c0_4 = arith.constant 0 : index
    %c0_5 = arith.constant 0 : index
    %4 = vector.load %arg2[%c0_4, %c0_5] : memref<16x16xbf16, #tpu.memory_space<vmem>>, vector<16x16xbf16>
    %5 = arith.truncf %3 : vector<16x64xf32> to vector<16x64xbf16>
    %cst_6 = arith.constant dense<0.000000e+00> : vector<16x64xf32>
    %6 = tpu.matmul %4, %5, %cst_6 {dimension_numbers = #tpu.dot_dimension_numbers<[1], [0], [0], [1], [0, 0, 1, 1], [], []>} : vector<16x16xbf16>, vector<16x64xbf16>, vector<16x64xf32> -> vector<16x64xf32>
    %7 = arith.negf %6 : vector<16x64xf32>
    %8 = math.exp %7 : vector<16x64xf32>
    %cst_7 = arith.constant 1.000000e+00 : f32
    %9 = vector.broadcast %cst_7 : f32 to vector<16x64xf32>
    %10 = arith.addf %9, %8 : vector<16x64xf32>
    %11 = arith.divf %9, %10 : vector<16x64xf32>
    %12 = arith.truncf %11 : vector<16x64xf32> to vector<16x64xbf16>
    %c0_8 = arith.constant 0 : index
    %c0_9 = arith.constant 0 : index
    %13 = vector.load %arg4[%c0_8, %c0_9] : memref<64x128xbf16, #tpu.memory_space<vmem>>, vector<64x128xbf16>
    %cst_10 = arith.constant dense<0.000000e+00> : vector<16x128xf32>
    %14 = tpu.matmul %12, %13, %cst_10 {dimension_numbers = #tpu.dot_dimension_numbers<[1], [0], [0], [1], [0, 0, 1, 1], [], []>} : vector<16x64xbf16>, vector<64x128xbf16>, vector<16x128xf32> -> vector<16x128xf32>
    %cst_11 = arith.constant 0.000000e+00 : f32
    %15 = vector.broadcast %cst_11 : f32 to vector<16x128xf32>
    %16 = arith.maximumf %14, %15 : vector<16x128xf32>
    %17 = arith.truncf %16 : vector<16x128xf32> to vector<16x128xbf16>
    %c0_12 = arith.constant 0 : index
    %c0_13 = arith.constant 0 : index
    %c0_14 = arith.constant 0 : index
    %18 = vector.load %arg5[%c0_12, %c0_13, %c0_14] : memref<1x16x128xbf16, #tpu.memory_space<vmem>>, vector<1x16x128xbf16>
    %19 = vector.shape_cast %18 : vector<1x16x128xbf16> to vector<16x128xbf16>
    %20 = vector.shape_cast %17 : vector<16x128xbf16> to vector<1x16x128xbf16>
    tpu.vector_store %arg5[%c0_12, %c0_13, %c0_14], %20 {strides = array<i32>} : memref<1x16x128xbf16, #tpu.memory_space<vmem>>, vector<1x16x128xbf16>,
    return
  }
  func.func @transform_0(%arg0: i32) -> (i32, i32, i32) {
    %c0_i32 = arith.constant 0 : i32
    %c0_i32_0 = arith.constant 0 : i32
    %c0_i32_1 = arith.constant 0 : i32
    return %arg0, %c0_i32, %c0_i32_0 : i32, i32, i32
  }
  func.func @transform_1(%arg0: i32) -> (i32, i32) {
    %c0_i32 = arith.constant 0 : i32
    %c0_i32_0 = arith.constant 0 : i32
    %c0_i32_1 = arith.constant 0 : i32
    return %c0_i32, %c0_i32_0 : i32, i32
  }
  func.func @transform_2(%arg0: i32) -> (i32, i32) {
    %c0_i32 = arith.constant 0 : i32
    %c0_i32_0 = arith.constant 0 : i32
    %c0_i32_1 = arith.constant 0 : i32
    return %c0_i32, %c0_i32_0 : i32, i32
  }
  func.func @transform_3(%arg0: i32) -> (i32, i32) {
    %c0_i32 = arith.constant 0 : i32
    %c0_i32_0 = arith.constant 0 : i32
    %c0_i32_1 = arith.constant 0 : i32
    return %c0_i32, %c0_i32_0 : i32, i32
  }
  func.func @transform_4(%arg0: i32) -> (i32, i32, i32) {
    %c0_i32 = arith.constant 0 : i32
    %c0_i32_0 = arith.constant 0 : i32
    %c0_i32_1 = arith.constant 0 : i32
    return %arg0, %c0_i32, %c0_i32_0 : i32, i32, i32
  }
}

</mosaic_0001>

<llo_original>
// kernel: tpu_custom_call.1
$region0: #{tpu_custom_call.1}
  #allocation0 [shape = 'u32[]', space=smem, size = 0x4, offset = 0x4, fixed_abs, tag = 'smem constant byte address 0x4 - core index']
  #allocation1 [shape = 'u32[144,128]{1,0:T(1,128)}', space=vmem, size = 0x12000, scoped, tag = 'internal scratch']
  %s0 = inlined_call_operand.hbm [shape: f32[8,128], index: 0, kind: input, shape index: {}]
  %s1 = inlined_call_operand.hbm [shape: f32[8,128], index: 1, kind: output, shape index: {}]
  %s2 = sld [smem:[#allocation0]]
  $region18: #{tpu_custom_call.1} parent=0
    _
  %s4 = ssub.s32 1, %s2
  %s5 = scalar_select 0, %s4, %s2
  $region1: #{tpu_custom_call.1} parent=0
    #allocation2 [shape = 'u8[4096]{0}', space=vmem, size = 0x1000, scoped, tag = 'input window, operand 0, single buffered']
    #allocation3 [shape = 's32[1]{0}', space=sflag, size = 0x4, scoped, tag = 'scoped memory for tpu_custom_call.1']
    #allocation4 [shape = 's32[1]{0}', space=sflag, size = 0x4, scoped, tag = 'scoped memory for tpu_custom_call.1']
    #allocation5 [shape = 'u8[4096]{0}', space=vmem, size = 0x1000, scoped, tag = 'output window, operand 0, single buffered']
    %6 = vsyncpa [#allocation3], 0
    %7 = vsyncpa [#allocation4], 0
    // Predicated region
    $region2: #{tpu_custom_call.1} parent=1 // pred_check
      _
    $region3: #{tpu_custom_call.1} parent=1 // pred_check_branch
      %9 = sbr.rel (0) target = $region5
    $region4: #{tpu_custom_call.1} parent=1 // pred_region
      %s11 = ssub.s32 128, 128
      %12 = vsyncadd [#allocation3], %s11
      %s14 = sshll.u32 [#allocation2], 4
      %s15 = int_to_ptr.vmem [resolvable:$true] %s14
      %17 = dma.hbm_to_vmem [thread:$0]  %s0, 128, %s15, [#allocation3]
    $region5: #{tpu_custom_call.1} parent=1 // pred_fallthru
      _
    // Predicated region
    $region6: #{tpu_custom_call.1} parent=1 // pred_check
      _
    $region7: #{tpu_custom_call.1} parent=1 // pred_check_branch
      %19 = sbr.rel (0) target = $region9
    $region8: #{tpu_custom_call.1} parent=1 // pred_region
      %20 = dma.done [#allocation3], 128
    $region9: #{tpu_custom_call.1} parent=1 // pred_fallthru
      _
    %v21 = vld [vmem:[#allocation2] sm:$0xff]
    %22 = vst [vmem:[#allocation5] sm:$0xff] %v21
    // Predicated region
    $region10: #{tpu_custom_call.1} parent=1 // pred_check
      _
    $region11: #{tpu_custom_call.1} parent=1 // pred_check_branch
      %24 = sbr.rel (0) target = $region13
    $region12: #{tpu_custom_call.1} parent=1 // pred_region
      %s26 = ssub.s32 128, 128
      %27 = vsyncadd [#allocation4], %s26
      %s29 = sshll.u32 [#allocation5], 4
      %s30 = int_to_ptr.vmem [resolvable:$true] %s29
      %32 = dma.vmem_to_hbm [thread:$0]  %s30, 128, %s1, [#allocation4]
    $region13: #{tpu_custom_call.1} parent=1 // pred_fallthru
      _
    // Predicated region
    $region14: #{tpu_custom_call.1} parent=1 // pred_check
      _
    $region15: #{tpu_custom_call.1} parent=1 // pred_check_branch
      %34 = sbr.rel (0) target = $region17
    $region16: #{tpu_custom_call.1} parent=1 // pred_region
      %35 = dma.done [#allocation4], 128
    $region17: #{tpu_custom_call.1} parent=1 // pred_fallthru
      _
    %36 = vsyncpa [#allocation3], 1
    %37 = vsyncpa [#allocation4], 1

// kernel: green_block_apply.1
$region0: #{green_block_apply.1}
  #allocation0 [shape = 'u32[]', space=smem, size = 0x4, offset = 0x4, fixed_abs, tag = 'smem constant byte address 0x4 - core index']
  #allocation1 [shape = 'u32[144,128]{1,0:T(1,128)}', space=vmem, size = 0x12000, scoped, tag = 'internal scratch']
  %s0 = inlined_call_operand.vmem [shape: bf16[1,16,64], index: 0, kind: input, shape index: {}]
  %s1 = inlined_call_operand.vmem [shape: bf16[16,16], index: 1, kind: input, shape index: {}]
  %s2 = inlined_call_operand.vmem [shape: bf16[64,64], index: 2, kind: input, shape index: {}]
  %s3 = inlined_call_operand.vmem [shape: bf16[64,128], index: 3, kind: input, shape index: {}]
  %s4 = inlined_call_operand.vmem [shape: bf16[1,16,128], index: 4, kind: output, shape index: {}]
  %s5 = sld [smem:[#allocation0]]
  $region26: #{green_block_apply.1} parent=0
    _
  %s7 = ssub.s32 1, %s5
  %s8 = scalar_select 0, %s7, %s5
  // Predicated region
  $region2: #{green_block_apply.1} parent=0 // pred_check
    _
  $region3: #{green_block_apply.1} parent=0 // pred_check_branch
    %10 = sbr.rel (0) target = $region5
  $region4: #{green_block_apply.1} parent=0 // pred_region
    _
  $region5: #{green_block_apply.1} parent=0 // pred_fallthru
    _
  // Predicated region
  $region6: #{green_block_apply.1} parent=0 // pred_check
    _
  $region7: #{green_block_apply.1} parent=0 // pred_check_branch
    %12 = sbr.rel (0) target = $region9
  $region8: #{green_block_apply.1} parent=0 // pred_region
    _
  $region9: #{green_block_apply.1} parent=0 // pred_fallthru
    _
  // Predicated region
  $region10: #{green_block_apply.1} parent=0 // pred_check
    _
  $region11: #{green_block_apply.1} parent=0 // pred_check_branch
    %14 = sbr.rel (0) target = $region13
  $region12: #{green_block_apply.1} parent=0 // pred_region
    _
  $region13: #{green_block_apply.1} parent=0 // pred_fallthru
    _
  // Predicated region
  $region14: #{green_block_apply.1} parent=0 // pred_check
    _
  $region15: #{green_block_apply.1} parent=0 // pred_check_branch
    %16 = sbr.rel (0) target = $region17
  $region16: #{green_block_apply.1} parent=0 // pred_region
    _
  $region17: #{green_block_apply.1} parent=0 // pred_fallthru
    _
  %v18 = vld [vmem:[%s0] sm:$0xf]
  %v19 = vld [vmem:[%s0 + $0x4] sm:$0xf]
  %v20 = vld [vmem:[%s2] sm:$0xf]
  %v21 = vld [vmem:[%s2 + $0x4] sm:$0xf]
  %v22 = vld [vmem:[%s2 + $0x8] sm:$0xf]
  %v23 = vld [vmem:[%s2 + $0xc] sm:$0xf]
  %v24 = vld [vmem:[%s2 + $0x10] sm:$0xf]
  %v25 = vld [vmem:[%s2 + $0x14] sm:$0xf]
  %v26 = vld [vmem:[%s2 + $0x18] sm:$0xf]
  %v27 = vld [vmem:[%s2 + $0x1c] sm:$0xf]
  %v30 = vunpack.c.l.b16 %v18
  %v31 = vunpack.c.l.b16 %v19
  %v32 = vpack.c.b16 %v31, %v30
  %v41 = vunpack.c.l.b16 %v20
  %v42 = vunpack.c.l.b16 %v21
  %v43 = vunpack.c.l.b16 %v22
  %v44 = vunpack.c.l.b16 %v23
  %v45 = vunpack.c.l.b16 %v24
  %v46 = vunpack.c.l.b16 %v25
  %v47 = vunpack.c.l.b16 %v26
  %v48 = vunpack.c.l.b16 %v27
  %v49 = vpack.c.b16 %v42, %v41
  %v50 = vpack.c.b16 %v44, %v43
  %v51 = vpack.c.b16 %v46, %v45
  %v52 = vpack.c.b16 %v48, %v47
  %vm57 = vcmask 523264
  %v59 = vsel %vm57, %v32, 0
  %61 = vmatprep.subr.bf16.mxu0 0
  %62 = vmatpush1.bf16.msra.mxu0 0
  %63 = vmatprep.subr.bf16.mxu0 0
  %64 = vmatpush1.bf16.msra.mxu0 0
  %65 = vmatprep.subr.bf16.mxu0 0
  %66 = vmatpush1.bf16.msra.mxu0 0
  %67 = vmatprep.subr.bf16.mxu0 0
  %68 = vmatpush1.bf16.msra.mxu0 0
  %69 = vmatprep.subr.bf16.mxu0 0
  %70 = vmatpush1.bf16.msra.mxu0 %v52
  %71 = vmatprep.subr.bf16.mxu0 0
  %72 = vmatpush1.bf16.msra.mxu0 %v51
  %73 = vmatprep.subr.bf16.mxu0 0
  %74 = vmatpush1.bf16.msra.mxu0 %v50
  %75 = vmatprep.subr.bf16.mxu0 0
  %76 = vmatpush1.bf16.msra.mxu0 %v49
  %77 = vmatprep.subr.bf16.mxu0 0
  %78 = vmatpush2.bf16.msra.mxu0 0
  %79 = vmatprep.subr.bf16.mxu0 0
  %80 = vmatpush2.bf16.msra.mxu0 0
  %81 = vmatprep.subr.bf16.mxu0 0
  %82 = vmatpush2.bf16.msra.mxu0 0
  %83 = vmatprep.subr.bf16.mxu0 0
  %84 = vmatpush2.bf16.msra.mxu0 0
  %85 = vmatprep.subr.bf16.mxu0 0
  %86 = vmatpush2.bf16.msra.mxu0 0
  %87 = vmatprep.subr.bf16.mxu0 0
  %88 = vmatpush2.bf16.msra.mxu0 0
  %89 = vmatprep.subr.bf16.mxu0 0
  %90 = vmatpush2.bf16.msra.mxu0 0
  %91 = vmatprep.subr.bf16.mxu0 0
  %92 = vmatpush2.bf16.msra.mxu0 0
  %93 = vmatprep.mubr.bf16.mxu0 0
  %94 = vmatmul.mubr.bf16.gmra.mxu0 %v59
  %v95 = vpop.f32.mrf.mxu0
  %v96 = vadd.f32 0.0, %v95
  %v97 = vpop.f32.mrf.mxu0
  %v98 = vpop.f32.mrf.mxu0
  %v99 = vadd.f32 0.0, %v98
  %v100 = vpop.f32.mrf.mxu0
  %101 = vdwg.mxu0
  %v102 = vld [vmem:[%s1] sm:$0xf]
  %v103 = vld [vmem:[%s1 + $0x4] sm:$0xf]
  %v104 = vpack.c.bf16 %v99, %v96
  %v107 = vunpack.c.l.b16 %v102
  %v108 = vunpack.c.l.b16 %v103
  %v109 = vpack.c.b16 %v108, %v107
  %vm110 = vcmask 130048
  %v112 = vsel %vm110, %v109, 0
  %114 = vmatprep.subr.bf16.mxu0 0
  %115 = vmatpush1.bf16.msra.mxu0 0
  %116 = vmatprep.subr.bf16.mxu0 0
  %117 = vmatpush1.bf16.msra.mxu0 0
  %118 = vmatprep.subr.bf16.mxu0 0
  %119 = vmatpush1.bf16.msra.mxu0 0
  %120 = vmatprep.subr.bf16.mxu0 0
  %121 = vmatpush1.bf16.msra.mxu0 0
  %122 = vmatprep.subr.bf16.mxu0 0
  %123 = vmatpush1.bf16.msra.mxu0 0
  %124 = vmatprep.subr.bf16.mxu0 0
  %125 = vmatpush1.bf16.msra.mxu0 0
  %126 = vmatprep.subr.bf16.mxu0 0
  %127 = vmatpush1.bf16.msra.mxu0 0
  %128 = vmatprep.subr.bf16.mxu0 0
  %129 = vmatpush1.bf16.msra.mxu0 %v104
  %130 = vmatprep.subr.bf16.mxu0 0
  %131 = vmatpush2.bf16.msra.mxu0 0
  %132 = vmatprep.subr.bf16.mxu0 0
  %133 = vmatpush2.bf16.msra.mxu0 0
  %134 = vmatprep.subr.bf16.mxu0 0
  %135 = vmatpush2.bf16.msra.mxu0 0
  %136 = vmatprep.subr.bf16.mxu0 0
  %137 = vmatpush2.bf16.msra.mxu0 0
  %138 = vmatprep.subr.bf16.mxu0 0
  %139 = vmatpush2.bf16.msra.mxu0 0
  %140 = vmatprep.subr.bf16.mxu0 0
  %141 = vmatpush2.bf16.msra.mxu0 0
  %142 = vmatprep.subr.bf16.mxu0 0
  %143 = vmatpush2.bf16.msra.mxu0 0
  %144 = vmatprep.subr.bf16.mxu0 0
  %145 = vmatpush2.bf16.msra.mxu0 0
  %146 = vmatprep.mubr.bf16.mxu0 0
  %147 = vmatmul.mubr.bf16.gmra.mxu0 %v112
  %v148 = vpop.f32.mrf.mxu0
  %v149 = vadd.f32 0.0, %v148
  %v150 = vpop.f32.mrf.mxu0
  %v151 = vpop.f32.mrf.mxu0
  %v152 = vadd.f32 0.0, %v151
  %v153 = vpop.f32.mrf.mxu0
  %154 = vdwg.mxu0
  %v155 = vxor.u32 %v149, 2147483648
  %v156 = vxor.u32 %v152, 2147483648
  %v157 = vmul.f32 %v155, 1.442695
  %v158 = vpow.pop %v157
  %v159 = vmul.f32 %v156, 1.442695
  %v160 = vpow.pop %v159
  %v161 = vadd.f32 %v158, 1.0
  %v162 = vadd.f32 %v160, 1.0
  %v163 = vrcp.pop %v161
  %v164 = vmul.f32 1.0, %v163
  %v165 = vrcp.pop %v162
  %v166 = vmul.f32 1.0, %v165
  %v167 = vpack.c.bf16 %v166, %v164
  %v168 = vld [vmem:[%s3] sm:$0xf]
  %v169 = vld [vmem:[%s3 + $0x4] sm:$0xf]
  %v170 = vld [vmem:[%s3 + $0x8] sm:$0xf]
  %v171 = vld [vmem:[%s3 + $0xc] sm:$0xf]
  %v172 = vld [vmem:[%s3 + $0x10] sm:$0xf]
  %v173 = vld [vmem:[%s3 + $0x14] sm:$0xf]
  %v174 = vld [vmem:[%s3 + $0x18] sm:$0xf]
  %v175 = vld [vmem:[%s3 + $0x1c] sm:$0xf]
  %v184 = vunpack.c.l.b16 %v168
  %v185 = vunpack.c.l.b16 %v169
  %v186 = vunpack.c.l.b16 %v170
  %v187 = vunpack.c.l.b16 %v171
  %v188 = vunpack.c.l.b16 %v172
  %v189 = vunpack.c.l.b16 %v173
  %v190 = vunpack.c.l.b16 %v174
  %v191 = vunpack.c.l.b16 %v175
  %v192 = vpack.c.b16 %v185, %v184
  %v193 = vpack.c.b16 %v187, %v186
  %v194 = vpack.c.b16 %v189, %v188
  %v195 = vpack.c.b16 %v191, %v190
  %v201 = vsel %vm57, %v167, 0
  %203 = vmatprep.subr.bf16.mxu0 0
  %204 = vmatpush1.bf16.msra.mxu0 0
  %205 = vmatprep.subr.bf16.mxu0 0
  %206 = vmatpush1.bf16.msra.mxu0 0
  %207 = vmatprep.subr.bf16.mxu0 0
  %208 = vmatpush1.bf16.msra.mxu0 0
  %209 = vmatprep.subr.bf16.mxu0 0
  %210 = vmatpush1.bf16.msra.mxu0 0
  %211 = vmatprep.subr.bf16.mxu0 0
  %212 = vmatpush1.bf16.msra.mxu0 %v195
  %213 = vmatprep.subr.bf16.mxu0 0
  %214 = vmatpush1.bf16.msra.mxu0 %v194
  %215 = vmatprep.subr.bf16.mxu0 0
  %216 = vmatpush1.bf16.msra.mxu0 %v193
  %217 = vmatprep.subr.bf16.mxu0 0
  %218 = vmatpush1.bf16.msra.mxu0 %v192
  %219 = vmatprep.subr.bf16.mxu0 0
  %220 = vmatpush2.bf16.msra.mxu0 0
  %221 = vmatprep.subr.bf16.mxu0 0
  %222 = vmatpush2.bf16.msra.mxu0 0
  %223 = vmatprep.subr.bf16.mxu0 0
  %224 = vmatpush2.bf16.msra.mxu0 0
  %225 = vmatprep.subr.bf16.mxu0 0
  %226 = vmatpush2.bf16.msra.mxu0 0
  %227 = vmatprep.subr.bf16.mxu0 0
  %228 = vmatpush2.bf16.msra.mxu0 0
  %229 = vmatprep.subr.bf16.mxu0 0
  %230 = vmatpush2.bf16.msra.mxu0 0
  %231 = vmatprep.subr.bf16.mxu0 0
  %232 = vmatpush2.bf16.msra.mxu0 0
  %233 = vmatprep.subr.bf16.mxu0 0
  %234 = vmatpush2.bf16.msra.mxu0 0
  %235 = vmatprep.mubr.bf16.mxu0 0
  %236 = vmatmul.mubr.bf16.gmra.mxu0 %v201
  %v237 = vpop.f32.mrf.mxu0
  %v238 = vadd.f32 0.0, %v237
  %v239 = vpop.f32.mrf.mxu0
  %v240 = vpop.f32.mrf.mxu0
  %v241 = vadd.f32 0.0, %v240
  %v242 = vpop.f32.mrf.mxu0
  %243 = vdwg.mxu0
  %v244 = vmax.f32 %v238, 0.0
  %v245 = vmax.f32 %v241, 0.0
  %v246 = vpack.c.bf16 %v245, %v244
  %v248 = vunpack.c.l.b16 %v246
  %v249 = vunpack.c.h.b16 %v246
  %v250 = vpack.c.b16 %v248, %v248
  %v251 = vpack.c.b16 %v249, %v249
  %254 = vst [vmem:[%s4] sm:$0xf] %v250
  %255 = vst [vmem:[%s4 + $0x4] sm:$0xf] %v251
  // Predicated region
  $region18: #{green_block_apply.1} parent=0 // pred_check
    _
  $region19: #{green_block_apply.1} parent=0 // pred_check_branch
    %257 = sbr.rel (0) target = $region21
  $region20: #{green_block_apply.1} parent=0 // pred_region
    _
  $region21: #{green_block_apply.1} parent=0 // pred_fallthru
    _
  // Predicated region
  $region22: #{green_block_apply.1} parent=0 // pred_check
    _
  $region23: #{green_block_apply.1} parent=0 // pred_check_branch
    %259 = sbr.rel (0) target = $region25
  $region24: #{green_block_apply.1} parent=0 // pred_region
    _
  $region25: #{green_block_apply.1} parent=0 // pred_fallthru
    _

</llo_original>
